<compile_context>
chip_gen: v7x
topology: tpu7x:2x2x1
jax: 0.10.0
libtpu: 0.0.40
codegen_flags: <defaults>
</compile_context>

<pallas_src>
import jax
import jax.numpy as jnp
from jax.experimental import pallas as pl
from jax.experimental.pallas import tpu as pltpu


# Packed-parameter layout inside the flat SMEM vector (32 f32 words):
#   [ 0:21)  w1 (3, 7) row-major  -> w1[j, k] at  j*7 + k
#   [21:24)  b1 (3,)              -> b1[j]    at  21 + j
#   [24:30)  w2 (2, 3) row-major  -> w2[j, k] at  24 + j*3 + k
#   [30:32)  b2 (2,)              -> b2[j]    at  30 + j
_IN, _HID, _OUT = 7, 3, 2
_W1_OFF, _B1_OFF, _W2_OFF, _B2_OFF = 0, 21, 24, 30
_LANES = 128


def mlp_kernel(params_ref, x_ref, out_ref):
    # params_ref: (32,) f32 in SMEM (resident across all grid steps)
    # x_ref:      (7, tc, 128) f32 in VMEM -- batch chunked over (sublane, lane)
    # out_ref:    (2, tc, 128) f32 in VMEM

    # hidden_j = relu(sum_k w1[j,k] * x[k] + b1[j]) -- full (tc,128) slab MACs.
    h = []
    for j in range(_HID):
        acc = x_ref[0] * params_ref[_W1_OFF + j * _IN]
        for k in range(1, _IN):
            acc = acc + x_ref[k] * params_ref[_W1_OFF + j * _IN + k]
        h.append(jnp.maximum(acc + params_ref[_B1_OFF + j], 0.0))

    # logits_j = sum_k w2[j,k] * h[k] + b2[j]
    z = []
    for j in range(_OUT):
        acc = h[0] * params_ref[_W2_OFF + j * _HID]
        for k in range(1, _HID):
            acc = acc + h[k] * params_ref[_W2_OFF + j * _HID + k]
        z.append(acc + params_ref[_B2_OFF + j])

    # 2-class log_softmax, stable softplus form:
    #   d = z1 - z0 ; sp = max(d,0) + log(1 + exp(-|d|))
    #   out0 = -sp ; out1 = d - sp
    d = z[1] - z[0]
    sp = jnp.maximum(d, 0.0) + jnp.log(1.0 + jnp.exp(-jnp.abs(d)))
    out_ref[0] = (-sp).astype(out_ref.dtype)
    out_ref[1] = (d - sp).astype(out_ref.dtype)


def _round_up(n, m):
    return ((n + m - 1) // m) * m


def mlp_forward(x, w1, b1, w2, b2, *, tile_b=131072):
    """Forward of MLP(7 -> 3 -> 2) + log_softmax.

    x: (B, 7) f32; w1: (3, 7); b1: (3,); w2: (2, 3); b2: (2,)  (PyTorch layouts)
    returns (B, 2) f32 log-probabilities.
    """
    B = x.shape[0]

    # Batch lives on the 128-lane axis, chunked into (n_chunks, 128) so every
    # kernel intermediate is a dense (8,128)-tiled vreg slab.
    bp = _round_up(max(B, 1), _LANES)
    n_chunks = bp // _LANES

    # Tile size in 128-chunks: either the full extent, or a multiple of 8
    # (the (8,128) block constraint on the last two dims).
    tc = max(min(tile_b // _LANES, n_chunks), 1)
    if tc < n_chunks:
        tc = max((tc // 8) * 8, 8)
    grid_n = pl.cdiv(n_chunks, tc)
    # v7x megacore: if there is enough work, make sure the "parallel" grid has
    # at least 2 steps so both TensorCores participate.
    if grid_n == 1 and n_chunks >= 16:
        tc = _round_up(pl.cdiv(n_chunks, 2), 8)
        grid_n = pl.cdiv(n_chunks, tc)

    # NOTE: keep inputs in their native dtype if they are bf16 to halve DMA
    # traffic; here we assume the PyTorch-default f32.
    x_t = jnp.transpose(x).astype(jnp.float32)            # (7, B)
    if bp != B:
        x_t = jnp.pad(x_t, ((0, 0), (0, bp - B)))         # pad only to 128-mult
    x3 = x_t.reshape(_IN, n_chunks, _LANES)                # contiguous -> free

    params = jnp.concatenate(
        [w1.reshape(-1), b1.reshape(-1), w2.reshape(-1), b2.reshape(-1)]
    ).astype(jnp.float32)                                  # (32,)

    out3 = pl.pallas_call(
        mlp_kernel,
        out_shape=jax.ShapeDtypeStruct((_OUT, n_chunks, _LANES), jnp.float32),
        grid=(grid_n,),
        in_specs=[
            # Whole 32-word parameter vector, resident in SMEM for all steps.
            pl.BlockSpec(memory_space=pltpu.MemorySpace.SMEM),
            # Lane/sublane-dense batch tile of x^T.
            pl.BlockSpec((_IN, tc, _LANES), lambda i: (0, i, 0)),
        ],
        out_specs=pl.BlockSpec((_OUT, tc, _LANES), lambda i: (0, i, 0)),
        compiler_params=pltpu.CompilerParams(
            dimension_semantics=("parallel",),
        ),
    )(params, x3)

    return jnp.transpose(out3.reshape(_OUT, bp)[:, :B])    # (B, 2)


def reference_forward(x, w1, b1, w2, b2):
    h = jnp.maximum(x @ w1.T + b1, 0.0)
    z = h @ w2.T + b2
    return jax.nn.log_softmax(z, axis=-1)


if __name__ == "__main__":
    key = jax.random.PRNGKey(0)
    k_x, k_w1, k_b1, k_w2, k_b2, k_x2, k_x3 = jax.random.split(key, 7)

    # PyTorch Linear parameter shapes: (out_features, in_features) / (out_features,)
    w1 = jax.random.uniform(k_w1, (3, 7), minval=-0.3, maxval=0.3, dtype=jnp.float32)
    b1 = jax.random.uniform(k_b1, (3,), minval=-0.3, maxval=0.3, dtype=jnp.float32)
    w2 = jax.random.uniform(k_w2, (2, 3), minval=-0.5, maxval=0.5, dtype=jnp.float32)
    b2 = jax.random.uniform(k_b2, (2,), minval=-0.5, maxval=0.5, dtype=jnp.float32)

    # Small demo batch (single partial 128-chunk).
    x = jax.random.normal(k_x, (8, 7), dtype=jnp.float32)
    out = mlp_forward(x, w1, b1, w2, b2)
    jax.block_until_ready(out)
    ref = reference_forward(x, w1, b1, w2, b2)
    assert out.shape == (8, 2)
    assert jnp.allclose(out, ref, atol=1e-5, rtol=1e-5), "mismatch vs reference (B=8)"

    # Ragged batch, default tile: single full-extent block (3 chunks).
    x3 = jax.random.normal(k_x3, (300, 7), dtype=jnp.float32)
    out3 = mlp_forward(x3, w1, b1, w2, b2)
    jax.block_until_ready(out3)
    ref3 = reference_forward(x3, w1, b1, w2, b2)
    assert out3.shape == (300, 2)
    assert jnp.allclose(out3, ref3, atol=1e-5, rtol=1e-5), "mismatch vs reference (B=300)"

    # Multi-step grid with a partial final block (10 chunks, tile of 8 chunks).
    x2 = jax.random.normal(k_x2, (1200, 7), dtype=jnp.float32)
    out2 = mlp_forward(x2, w1, b1, w2, b2, tile_b=1024)
    jax.block_until_ready(out2)
    ref2 = reference_forward(x2, w1, b1, w2, b2)
    assert out2.shape == (1200, 2)
    assert jnp.allclose(out2, ref2, atol=1e-5, rtol=1e-5), "mismatch vs reference (B=1200)"

    print("KERNEL_OK")
</pallas_src>

<mosaic_0001>
module attributes {stable_mosaic.version = 11 : i64} {
  func.func @mlp_kernel(%arg0: i32, %arg1: memref<32xf32, #tpu.memory_space<smem>>, %arg2: memref<7x1x128xf32, #tpu.memory_space<vmem>>, %arg3: memref<2x1x128xf32, #tpu.memory_space<vmem>>) attributes {dimension_semantics = [#tpu.dimension_semantics<parallel>], iteration_bounds = array<i64: 1>, scalar_prefetch = 0 : i64, scratch_operands = 0 : i64, tpu.core_type = #tpu.core_type<tc>, window_params = [{transform_indices = @transform_0, window_bounds = array<i64: 32>}, {transform_indices = @transform_1, window_bounds = array<i64: 7, 1, 128>}, {transform_indices = @transform_2, window_bounds = array<i64: 2, 1, 128>}]} {
    %c0 = arith.constant 0 : index
    %c0_0 = arith.constant 0 : index
    %c0_1 = arith.constant 0 : index
    %0 = vector.load %arg2[%c0, %c0_0, %c0_1] : memref<7x1x128xf32, #tpu.memory_space<vmem>>, vector<1x1x128xf32>
    %1 = vector.shape_cast %0 : vector<1x1x128xf32> to vector<1x128xf32>
    %c0_2 = arith.constant 0 : index
    %2 = memref.load %arg1[%c0_2] : memref<32xf32, #tpu.memory_space<smem>>
    %3 = vector.broadcast %2 : f32 to vector<1x128xf32>
    %4 = arith.mulf %1, %3 : vector<1x128xf32>
    %c1 = arith.constant 1 : index
    %c0_3 = arith.constant 0 : index
    %c0_4 = arith.constant 0 : index
    %5 = vector.load %arg2[%c1, %c0_3, %c0_4] : memref<7x1x128xf32, #tpu.memory_space<vmem>>, vector<1x1x128xf32>
    %6 = vector.shape_cast %5 : vector<1x1x128xf32> to vector<1x128xf32>
    %c1_5 = arith.constant 1 : index
    %7 = memref.load %arg1[%c1_5] : memref<32xf32, #tpu.memory_space<smem>>
    %8 = vector.broadcast %7 : f32 to vector<1x128xf32>
    %9 = arith.mulf %6, %8 : vector<1x128xf32>
    %10 = arith.addf %4, %9 : vector<1x128xf32>
    %c2 = arith.constant 2 : index
    %c0_6 = arith.constant 0 : index
    %c0_7 = arith.constant 0 : index
    %11 = vector.load %arg2[%c2, %c0_6, %c0_7] : memref<7x1x128xf32, #tpu.memory_space<vmem>>, vector<1x1x128xf32>
    %12 = vector.shape_cast %11 : vector<1x1x128xf32> to vector<1x128xf32>
    %c2_8 = arith.constant 2 : index
    %13 = memref.load %arg1[%c2_8] : memref<32xf32, #tpu.memory_space<smem>>
    %14 = vector.broadcast %13 : f32 to vector<1x128xf32>
    %15 = arith.mulf %12, %14 : vector<1x128xf32>
    %16 = arith.addf %10, %15 : vector<1x128xf32>
    %c3 = arith.constant 3 : index
    %c0_9 = arith.constant 0 : index
    %c0_10 = arith.constant 0 : index
    %17 = vector.load %arg2[%c3, %c0_9, %c0_10] : memref<7x1x128xf32, #tpu.memory_space<vmem>>, vector<1x1x128xf32>
    %18 = vector.shape_cast %17 : vector<1x1x128xf32> to vector<1x128xf32>
    %c3_11 = arith.constant 3 : index
    %19 = memref.load %arg1[%c3_11] : memref<32xf32, #tpu.memory_space<smem>>
    %20 = vector.broadcast %19 : f32 to vector<1x128xf32>
    %21 = arith.mulf %18, %20 : vector<1x128xf32>
    %22 = arith.addf %16, %21 : vector<1x128xf32>
    %c4 = arith.constant 4 : index
    %c0_12 = arith.constant 0 : index
    %c0_13 = arith.constant 0 : index
    %23 = vector.load %arg2[%c4, %c0_12, %c0_13] : memref<7x1x128xf32, #tpu.memory_space<vmem>>, vector<1x1x128xf32>
    %24 = vector.shape_cast %23 : vector<1x1x128xf32> to vector<1x128xf32>
    %c4_14 = arith.constant 4 : index
    %25 = memref.load %arg1[%c4_14] : memref<32xf32, #tpu.memory_space<smem>>
    %26 = vector.broadcast %25 : f32 to vector<1x128xf32>
    %27 = arith.mulf %24, %26 : vector<1x128xf32>
    %28 = arith.addf %22, %27 : vector<1x128xf32>
    %c5 = arith.constant 5 : index
    %c0_15 = arith.constant 0 : index
    %c0_16 = arith.constant 0 : index
    %29 = vector.load %arg2[%c5, %c0_15, %c0_16] : memref<7x1x128xf32, #tpu.memory_space<vmem>>, vector<1x1x128xf32>
    %30 = vector.shape_cast %29 : vector<1x1x128xf32> to vector<1x128xf32>
    %c5_17 = arith.constant 5 : index
    %31 = memref.load %arg1[%c5_17] : memref<32xf32, #tpu.memory_space<smem>>
    %32 = vector.broadcast %31 : f32 to vector<1x128xf32>
    %33 = arith.mulf %30, %32 : vector<1x128xf32>
    %34 = arith.addf %28, %33 : vector<1x128xf32>
    %c6 = arith.constant 6 : index
    %c0_18 = arith.constant 0 : index
    %c0_19 = arith.constant 0 : index
    %35 = vector.load %arg2[%c6, %c0_18, %c0_19] : memref<7x1x128xf32, #tpu.memory_space<vmem>>, vector<1x1x128xf32>
    %36 = vector.shape_cast %35 : vector<1x1x128xf32> to vector<1x128xf32>
    %c6_20 = arith.constant 6 : index
    %37 = memref.load %arg1[%c6_20] : memref<32xf32, #tpu.memory_space<smem>>
    %38 = vector.broadcast %37 : f32 to vector<1x128xf32>
    %39 = arith.mulf %36, %38 : vector<1x128xf32>
    %40 = arith.addf %34, %39 : vector<1x128xf32>
    %c21 = arith.constant 21 : index
    %41 = memref.load %arg1[%c21] : memref<32xf32, #tpu.memory_space<smem>>
    %42 = vector.broadcast %41 : f32 to vector<1x128xf32>
    %43 = arith.addf %40, %42 : vector<1x128xf32>
    %cst = arith.constant 0.000000e+00 : f32
    %44 = vector.broadcast %cst : f32 to vector<1x128xf32>
    %45 = arith.maximumf %43, %44 : vector<1x128xf32>
    %c0_21 = arith.constant 0 : index
    %c0_22 = arith.constant 0 : index
    %c0_23 = arith.constant 0 : index
    %46 = vector.load %arg2[%c0_21, %c0_22, %c0_23] : memref<7x1x128xf32, #tpu.memory_space<vmem>>, vector<1x1x128xf32>
    %47 = vector.shape_cast %46 : vector<1x1x128xf32> to vector<1x128xf32>
    %c7 = arith.constant 7 : index
    %48 = memref.load %arg1[%c7] : memref<32xf32, #tpu.memory_space<smem>>
    %49 = vector.broadcast %48 : f32 to vector<1x128xf32>
    %50 = arith.mulf %47, %49 : vector<1x128xf32>
    %c1_24 = arith.constant 1 : index
    %c0_25 = arith.constant 0 : index
    %c0_26 = arith.constant 0 : index
    %51 = vector.load %arg2[%c1_24, %c0_25, %c0_26] : memref<7x1x128xf32, #tpu.memory_space<vmem>>, vector<1x1x128xf32>
    %52 = vector.shape_cast %51 : vector<1x1x128xf32> to vector<1x128xf32>
    %c8 = arith.constant 8 : index
    %53 = memref.load %arg1[%c8] : memref<32xf32, #tpu.memory_space<smem>>
    %54 = vector.broadcast %53 : f32 to vector<1x128xf32>
    %55 = arith.mulf %52, %54 : vector<1x128xf32>
    %56 = arith.addf %50, %55 : vector<1x128xf32>
    %c2_27 = arith.constant 2 : index
    %c0_28 = arith.constant 0 : index
    %c0_29 = arith.constant 0 : index
    %57 = vector.load %arg2[%c2_27, %c0_28, %c0_29] : memref<7x1x128xf32, #tpu.memory_space<vmem>>, vector<1x1x128xf32>
    %58 = vector.shape_cast %57 : vector<1x1x128xf32> to vector<1x128xf32>
    %c9 = arith.constant 9 : index
    %59 = memref.load %arg1[%c9] : memref<32xf32, #tpu.memory_space<smem>>
    %60 = vector.broadcast %59 : f32 to vector<1x128xf32>
    %61 = arith.mulf %58, %60 : vector<1x128xf32>
    %62 = arith.addf %56, %61 : vector<1x128xf32>
    %c3_30 = arith.constant 3 : index
    %c0_31 = arith.constant 0 : index
    %c0_32 = arith.constant 0 : index
    %63 = vector.load %arg2[%c3_30, %c0_31, %c0_32] : memref<7x1x128xf32, #tpu.memory_space<vmem>>, vector<1x1x128xf32>
    %64 = vector.shape_cast %63 : vector<1x1x128xf32> to vector<1x128xf32>
    %c10 = arith.constant 10 : index
    %65 = memref.load %arg1[%c10] : memref<32xf32, #tpu.memory_space<smem>>
    %66 = vector.broadcast %65 : f32 to vector<1x128xf32>
    %67 = arith.mulf %64, %66 : vector<1x128xf32>
    %68 = arith.addf %62, %67 : vector<1x128xf32>
    %c4_33 = arith.constant 4 : index
    %c0_34 = arith.constant 0 : index
    %c0_35 = arith.constant 0 : index
    %69 = vector.load %arg2[%c4_33, %c0_34, %c0_35] : memref<7x1x128xf32, #tpu.memory_space<vmem>>, vector<1x1x128xf32>
    %70 = vector.shape_cast %69 : vector<1x1x128xf32> to vector<1x128xf32>
    %c11 = arith.constant 11 : index
    %71 = memref.load %arg1[%c11] : memref<32xf32, #tpu.memory_space<smem>>
    %72 = vector.broadcast %71 : f32 to vector<1x128xf32>
    %73 = arith.mulf %70, %72 : vector<1x128xf32>
    %74 = arith.addf %68, %73 : vector<1x128xf32>
    %c5_36 = arith.constant 5 : index
    %c0_37 = arith.constant 0 : index
    %c0_38 = arith.constant 0 : index
    %75 = vector.load %arg2[%c5_36, %c0_37, %c0_38] : memref<7x1x128xf32, #tpu.memory_space<vmem>>, vector<1x1x128xf32>
    %76 = vector.shape_cast %75 : vector<1x1x128xf32> to vector<1x128xf32>
    %c12 = arith.constant 12 : index
    %77 = memref.load %arg1[%c12] : memref<32xf32, #tpu.memory_space<smem>>
    %78 = vector.broadcast %77 : f32 to vector<1x128xf32>
    %79 = arith.mulf %76, %78 : vector<1x128xf32>
    %80 = arith.addf %74, %79 : vector<1x128xf32>
    %c6_39 = arith.constant 6 : index
    %c0_40 = arith.constant 0 : index
    %c0_41 = arith.constant 0 : index
    %81 = vector.load %arg2[%c6_39, %c0_40, %c0_41] : memref<7x1x128xf32, #tpu.memory_space<vmem>>, vector<1x1x128xf32>
    %82 = vector.shape_cast %81 : vector<1x1x128xf32> to vector<1x128xf32>
    %c13 = arith.constant 13 : index
    %83 = memref.load %arg1[%c13] : memref<32xf32, #tpu.memory_space<smem>>
    %84 = vector.broadcast %83 : f32 to vector<1x128xf32>
    %85 = arith.mulf %82, %84 : vector<1x128xf32>
    %86 = arith.addf %80, %85 : vector<1x128xf32>
    %c22 = arith.constant 22 : index
    %87 = memref.load %arg1[%c22] : memref<32xf32, #tpu.memory_space<smem>>
    %88 = vector.broadcast %87 : f32 to vector<1x128xf32>
    %89 = arith.addf %86, %88 : vector<1x128xf32>
    %cst_42 = arith.constant 0.000000e+00 : f32
    %90 = vector.broadcast %cst_42 : f32 to vector<1x128xf32>
    %91 = arith.maximumf %89, %90 : vector<1x128xf32>
    %c0_43 = arith.constant 0 : index
    %c0_44 = arith.constant 0 : index
    %c0_45 = arith.constant 0 : index
    %92 = vector.load %arg2[%c0_43, %c0_44, %c0_45] : memref<7x1x128xf32, #tpu.memory_space<vmem>>, vector<1x1x128xf32>
    %93 = vector.shape_cast %92 : vector<1x1x128xf32> to vector<1x128xf32>
    %c14 = arith.constant 14 : index
    %94 = memref.load %arg1[%c14] : memref<32xf32, #tpu.memory_space<smem>>
    %95 = vector.broadcast %94 : f32 to vector<1x128xf32>
    %96 = arith.mulf %93, %95 : vector<1x128xf32>
    %c1_46 = arith.constant 1 : index
    %c0_47 = arith.constant 0 : index
    %c0_48 = arith.constant 0 : index
    %97 = vector.load %arg2[%c1_46, %c0_47, %c0_48] : memref<7x1x128xf32, #tpu.memory_space<vmem>>, vector<1x1x128xf32>
    %98 = vector.shape_cast %97 : vector<1x1x128xf32> to vector<1x128xf32>
    %c15 = arith.constant 15 : index
    %99 = memref.load %arg1[%c15] : memref<32xf32, #tpu.memory_space<smem>>
    %100 = vector.broadcast %99 : f32 to vector<1x128xf32>
    %101 = arith.mulf %98, %100 : vector<1x128xf32>
    %102 = arith.addf %96, %101 : vector<1x128xf32>
    %c2_49 = arith.constant 2 : index
    %c0_50 = arith.constant 0 : index
    %c0_51 = arith.constant 0 : index
    %103 = vector.load %arg2[%c2_49, %c0_50, %c0_51] : memref<7x1x128xf32, #tpu.memory_space<vmem>>, vector<1x1x128xf32>
    %104 = vector.shape_cast %103 : vector<1x1x128xf32> to vector<1x128xf32>
    %c16 = arith.constant 16 : index
    %105 = memref.load %arg1[%c16] : memref<32xf32, #tpu.memory_space<smem>>
    %106 = vector.broadcast %105 : f32 to vector<1x128xf32>
    %107 = arith.mulf %104, %106 : vector<1x128xf32>
    %108 = arith.addf %102, %107 : vector<1x128xf32>
    %c3_52 = arith.constant 3 : index
    %c0_53 = arith.constant 0 : index
    %c0_54 = arith.constant 0 : index
    %109 = vector.load %arg2[%c3_52, %c0_53, %c0_54] : memref<7x1x128xf32, #tpu.memory_space<vmem>>, vector<1x1x128xf32>
    %110 = vector.shape_cast %109 : vector<1x1x128xf32> to vector<1x128xf32>
    %c17 = arith.constant 17 : index
    %111 = memref.load %arg1[%c17] : memref<32xf32, #tpu.memory_space<smem>>
    %112 = vector.broadcast %111 : f32 to vector<1x128xf32>
    %113 = arith.mulf %110, %112 : vector<1x128xf32>
    %114 = arith.addf %108, %113 : vector<1x128xf32>
    %c4_55 = arith.constant 4 : index
    %c0_56 = arith.constant 0 : index
    %c0_57 = arith.constant 0 : index
    %115 = vector.load %arg2[%c4_55, %c0_56, %c0_57] : memref<7x1x128xf32, #tpu.memory_space<vmem>>, vector<1x1x128xf32>
    %116 = vector.shape_cast %115 : vector<1x1x128xf32> to vector<1x128xf32>
    %c18 = arith.constant 18 : index
    %117 = memref.load %arg1[%c18] : memref<32xf32, #tpu.memory_space<smem>>
    %118 = vector.broadcast %117 : f32 to vector<1x128xf32>
    %119 = arith.mulf %116, %118 : vector<1x128xf32>
    %120 = arith.addf %114, %119 : vector<1x128xf32>
    %c5_58 = arith.constant 5 : index
    %c0_59 = arith.constant 0 : index
    %c0_60 = arith.constant 0 : index
    %121 = vector.load %arg2[%c5_58, %c0_59, %c0_60] : memref<7x1x128xf32, #tpu.memory_space<vmem>>, vector<1x1x128xf32>
    %122 = vector.shape_cast %121 : vector<1x1x128xf32> to vector<1x128xf32>
    %c19 = arith.constant 19 : index
    %123 = memref.load %arg1[%c19] : memref<32xf32, #tpu.memory_space<smem>>
    %124 = vector.broadcast %123 : f32 to vector<1x128xf32>
    %125 = arith.mulf %122, %124 : vector<1x128xf32>
    %126 = arith.addf %120, %125 : vector<1x128xf32>
    %c6_61 = arith.constant 6 : index
    %c0_62 = arith.constant 0 : index
    %c0_63 = arith.constant 0 : index
    %127 = vector.load %arg2[%c6_61, %c0_62, %c0_63] : memref<7x1x128xf32, #tpu.memory_space<vmem>>, vector<1x1x128xf32>
    %128 = vector.shape_cast %127 : vector<1x1x128xf32> to vector<1x128xf32>
    %c20 = arith.constant 20 : index
    %129 = memref.load %arg1[%c20] : memref<32xf32, #tpu.memory_space<smem>>
    %130 = vector.broadcast %129 : f32 to vector<1x128xf32>
    %131 = arith.mulf %128, %130 : vector<1x128xf32>
    %132 = arith.addf %126, %131 : vector<1x128xf32>
    %c23 = arith.constant 23 : index
    %133 = memref.load %arg1[%c23] : memref<32xf32, #tpu.memory_space<smem>>
    %134 = vector.broadcast %133 : f32 to vector<1x128xf32>
    %135 = arith.addf %132, %134 : vector<1x128xf32>
    %cst_64 = arith.constant 0.000000e+00 : f32
    %136 = vector.broadcast %cst_64 : f32 to vector<1x128xf32>
    %137 = arith.maximumf %135, %136 : vector<1x128xf32>
    %c24 = arith.constant 24 : index
    %138 = memref.load %arg1[%c24] : memref<32xf32, #tpu.memory_space<smem>>
    %139 = vector.broadcast %138 : f32 to vector<1x128xf32>
    %140 = arith.mulf %45, %139 : vector<1x128xf32>
    %c25 = arith.constant 25 : index
    %141 = memref.load %arg1[%c25] : memref<32xf32, #tpu.memory_space<smem>>
    %142 = vector.broadcast %141 : f32 to vector<1x128xf32>
    %143 = arith.mulf %91, %142 : vector<1x128xf32>
    %144 = arith.addf %140, %143 : vector<1x128xf32>
    %c26 = arith.constant 26 : index
    %145 = memref.load %arg1[%c26] : memref<32xf32, #tpu.memory_space<smem>>
    %146 = vector.broadcast %145 : f32 to vector<1x128xf32>
    %147 = arith.mulf %137, %146 : vector<1x128xf32>
    %148 = arith.addf %144, %147 : vector<1x128xf32>
    %c30 = arith.constant 30 : index
    %149 = memref.load %arg1[%c30] : memref<32xf32, #tpu.memory_space<smem>>
    %150 = vector.broadcast %149 : f32 to vector<1x128xf32>
    %151 = arith.addf %148, %150 : vector<1x128xf32>
    %c27 = arith.constant 27 : index
    %152 = memref.load %arg1[%c27] : memref<32xf32, #tpu.memory_space<smem>>
    %153 = vector.broadcast %152 : f32 to vector<1x128xf32>
    %154 = arith.mulf %45, %153 : vector<1x128xf32>
    %c28 = arith.constant 28 : index
    %155 = memref.load %arg1[%c28] : memref<32xf32, #tpu.memory_space<smem>>
    %156 = vector.broadcast %155 : f32 to vector<1x128xf32>
    %157 = arith.mulf %91, %156 : vector<1x128xf32>
    %158 = arith.addf %154, %157 : vector<1x128xf32>
    %c29 = arith.constant 29 : index
    %159 = memref.load %arg1[%c29] : memref<32xf32, #tpu.memory_space<smem>>
    %160 = vector.broadcast %159 : f32 to vector<1x128xf32>
    %161 = arith.mulf %137, %160 : vector<1x128xf32>
    %162 = arith.addf %158, %161 : vector<1x128xf32>
    %c31 = arith.constant 31 : index
    %163 = memref.load %arg1[%c31] : memref<32xf32, #tpu.memory_space<smem>>
    %164 = vector.broadcast %163 : f32 to vector<1x128xf32>
    %165 = arith.addf %162, %164 : vector<1x128xf32>
    %166 = arith.subf %165, %151 : vector<1x128xf32>
    %cst_65 = arith.constant 0.000000e+00 : f32
    %167 = vector.broadcast %cst_65 : f32 to vector<1x128xf32>
    %168 = arith.maximumf %166, %167 : vector<1x128xf32>
    %169 = math.absf %166 : vector<1x128xf32>
    %cst_66 = arith.constant 0.000000e+00 : f32
    %170 = vector.broadcast %cst_66 : f32 to vector<1x128xf32>
    %171 = arith.subf %170, %169 : vector<1x128xf32>
    %172 = math.exp %171 : vector<1x128xf32>
    %cst_67 = arith.constant 1.000000e+00 : f32
    %173 = vector.broadcast %cst_67 : f32 to vector<1x128xf32>
    %174 = arith.addf %173, %172 : vector<1x128xf32>
    %175 = math.log %174 : vector<1x128xf32>
    %176 = arith.addf %168, %175 : vector<1x128xf32>
    %cst_68 = arith.constant 0.000000e+00 : f32
    %177 = vector.broadcast %cst_68 : f32 to vector<1x128xf32>
    %178 = arith.subf %177, %176 : vector<1x128xf32>
    %c0_69 = arith.constant 0 : index
    %c0_70 = arith.constant 0 : index
    %c0_71 = arith.constant 0 : index
    %179 = vector.load %arg3[%c0_69, %c0_70, %c0_71] : memref<2x1x128xf32, #tpu.memory_space<vmem>>, vector<1x1x128xf32>
    %180 = vector.shape_cast %179 : vector<1x1x128xf32> to vector<1x128xf32>
    %181 = vector.shape_cast %178 : vector<1x128xf32> to vector<1x1x128xf32>
    tpu.vector_store %arg3[%c0_69, %c0_70, %c0_71], %181 {strides = array<i32>} : memref<2x1x128xf32, #tpu.memory_space<vmem>>, vector<1x1x128xf32>,
    %182 = arith.subf %166, %176 : vector<1x128xf32>
    %c1_72 = arith.constant 1 : index
    %c0_73 = arith.constant 0 : index
    %c0_74 = arith.constant 0 : index
    %183 = vector.load %arg3[%c1_72, %c0_73, %c0_74] : memref<2x1x128xf32, #tpu.memory_space<vmem>>, vector<1x1x128xf32>
    %184 = vector.shape_cast %183 : vector<1x1x128xf32> to vector<1x128xf32>
    %185 = vector.shape_cast %182 : vector<1x128xf32> to vector<1x1x128xf32>
    tpu.vector_store %arg3[%c1_72, %c0_73, %c0_74], %185 {strides = array<i32>} : memref<2x1x128xf32, #tpu.memory_space<vmem>>, vector<1x1x128xf32>,
    return
  }
  func.func @transform_0(%arg0: i32) -> i32 {
    %c0_i32 = arith.constant 0 : i32
    %c0_i32_0 = arith.constant 0 : i32
    return %c0_i32 : i32
  }
  func.func @transform_1(%arg0: i32) -> (i32, i32, i32) {
    %c0_i32 = arith.constant 0 : i32
    %c0_i32_0 = arith.constant 0 : i32
    %c0_i32_1 = arith.constant 0 : i32
    return %c0_i32, %arg0, %c0_i32_0 : i32, i32, i32
  }
  func.func @transform_2(%arg0: i32) -> (i32, i32, i32) {
    %c0_i32 = arith.constant 0 : i32
    %c0_i32_0 = arith.constant 0 : i32
    %c0_i32_1 = arith.constant 0 : i32
    return %c0_i32, %arg0, %c0_i32_0 : i32, i32, i32
  }
}

</mosaic_0001>

<llo_original>
// kernel: tpu_custom_call.1
$region0: #{tpu_custom_call.1}
  #allocation0 [shape = 'u32[]', space=smem, size = 0x4, offset = 0x4, fixed_abs, tag = 'smem constant byte address 0x4 - core index']
  #allocation1 [shape = 'u32[144,128]{1,0:T(1,128)}', space=vmem, size = 0x12000, scoped, tag = 'internal scratch']
  %s0 = inlined_call_operand.hbm [shape: f32[32], index: 0, kind: input, shape index: {}]
  %s1 = inlined_call_operand.hbm [shape: f32[7,1,128], index: 1, kind: input, shape index: {}]
  %s2 = inlined_call_operand.hbm [shape: f32[2,1,128], index: 2, kind: output, shape index: {}]
  %s3 = sld [smem:[#allocation0]]
  $region26: #{tpu_custom_call.1} parent=0
    _
  %s5 = ssub.s32 1, %s3
  %s6 = scalar_select 0, %s5, %s3
  $region1: #{tpu_custom_call.1} parent=0
    #allocation2 [shape = 'u8[512]{0}', space=smem, size = 0x200, scoped, tag = 'input window, operand 0, single buffered']
    #allocation3 [shape = 's32[1]{0}', space=sflag, size = 0x4, scoped, tag = 'scoped memory for tpu_custom_call.1']
    #allocation4 [shape = 's32[1]{0}', space=sflag, size = 0x4, scoped, tag = 'scoped memory for tpu_custom_call.1']
    #allocation5 [shape = 's32[1]{0}', space=sflag, size = 0x4, scoped, tag = 'scoped memory for tpu_custom_call.1']
    #allocation6 [shape = 'u8[3584]{0}', space=vmem, size = 0x1000, scoped, tag = 'input window, operand 1, single buffered']
    #allocation7 [shape = 'u8[1024]{0}', space=vmem, size = 0x400, scoped, tag = 'output window, operand 0, single buffered']
    %7 = vsyncpa [#allocation5], 0
    %8 = vsyncpa [#allocation3], 0
    %9 = vsyncpa [#allocation4], 0
    // Predicated region
    $region2: #{tpu_custom_call.1} parent=1 // pred_check
      _
    $region3: #{tpu_custom_call.1} parent=1 // pred_check_branch
      %11 = sbr.rel (0) target = $region5
    $region4: #{tpu_custom_call.1} parent=1 // pred_region
      %s13 = ssub.s32 16, 16
      %14 = vsyncadd [#allocation5], %s13
      %17 = dma.hbm_to_smem %s0, 16, [#allocation2], [#allocation5]
    $region5: #{tpu_custom_call.1} parent=1 // pred_fallthru
      _
    // Predicated region
    $region6: #{tpu_custom_call.1} parent=1 // pred_check
      _
    $region7: #{tpu_custom_call.1} parent=1 // pred_check_branch
      %19 = sbr.rel (0) target = $region9
    $region8: #{tpu_custom_call.1} parent=1 // pred_region
      %s21 = ssub.s32 112, 112
      %22 = vsyncadd [#allocation3], %s21
      %s23 = sshll.u32 [#allocation6], 4
      %s24 = int_to_ptr.vmem [resolvable:$true] %s23
      %29 = dma.hbm_to_vmem [thread:$0]  %s1, 112, %s24, [#allocation3], 16, 16, 1
    $region9: #{tpu_custom_call.1} parent=1 // pred_fallthru
      _
    // Predicated region
    $region10: #{tpu_custom_call.1} parent=1 // pred_check
      _
    $region11: #{tpu_custom_call.1} parent=1 // pred_check_branch
      %31 = sbr.rel (0) target = $region13
    $region12: #{tpu_custom_call.1} parent=1 // pred_region
      %32 = dma.done [#allocation5], 16
    $region13: #{tpu_custom_call.1} parent=1 // pred_fallthru
      _
    // Predicated region
    $region14: #{tpu_custom_call.1} parent=1 // pred_check
      _
    $region15: #{tpu_custom_call.1} parent=1 // pred_check_branch
      %34 = sbr.rel (0) target = $region17
    $region16: #{tpu_custom_call.1} parent=1 // pred_region
      %35 = dma.done [#allocation3], 112
    $region17: #{tpu_custom_call.1} parent=1 // pred_fallthru
      _
    %36 = sfence
    %v37 = vld [vmem:[#allocation6] sm:$0x1]
    %s38 = sld [smem:[#allocation2]]
    %v39 = vstv %s38
    %v40 = vmul.f32 %v37, %v39
    %s41 = scalar_lea.vmem [#allocation6], 1
    %v42 = vld [vmem:[%s41] sm:$0x1]
    %s43 = sld [smem:[#allocation2 + $0x1]]
    %v44 = vstv %s43
    %v45 = vmul.f32 %v42, %v44
    %v46 = vadd.f32 %v40, %v45
    %s47 = scalar_lea.vmem [#allocation6], 2
    %v48 = vld [vmem:[%s47] sm:$0x1]
    %s49 = sld [smem:[#allocation2 + $0x2]]
    %v50 = vstv %s49
    %v51 = vmul.f32 %v48, %v50
    %v52 = vadd.f32 %v46, %v51
    %s53 = scalar_lea.vmem [#allocation6], 3
    %v54 = vld [vmem:[%s53] sm:$0x1]
    %s55 = sld [smem:[#allocation2 + $0x3]]
    %v56 = vstv %s55
    %v57 = vmul.f32 %v54, %v56
    %v58 = vadd.f32 %v52, %v57
    %s59 = scalar_lea.vmem [#allocation6], 4
    %v60 = vld [vmem:[%s59] sm:$0x1]
    %s61 = sld [smem:[#allocation2 + $0x4]]
    %v62 = vstv %s61
    %v63 = vmul.f32 %v60, %v62
    %v64 = vadd.f32 %v58, %v63
    %s65 = scalar_lea.vmem [#allocation6], 5
    %v66 = vld [vmem:[%s65] sm:$0x1]
    %s67 = sld [smem:[#allocation2 + $0x5]]
    %v68 = vstv %s67
    %v69 = vmul.f32 %v66, %v68
    %v70 = vadd.f32 %v64, %v69
    %s71 = scalar_lea.vmem [#allocation6], 6
    %v72 = vld [vmem:[%s71] sm:$0x1]
    %s73 = sld [smem:[#allocation2 + $0x6]]
    %v74 = vstv %s73
    %v75 = vmul.f32 %v72, %v74
    %v76 = vadd.f32 %v70, %v75
    %s77 = sld [smem:[#allocation2 + $0x15]]
    %v78 = vstv %s77
    %v79 = vadd.f32 %v76, %v78
    %v80 = vmax.f32 %v79, 0.0
    %s81 = sld [smem:[#allocation2 + $0x7]]
    %v82 = vstv %s81
    %v83 = vmul.f32 %v37, %v82
    %s84 = sld [smem:[#allocation2 + $0x8]]
    %v85 = vstv %s84
    %v86 = vmul.f32 %v42, %v85
    %v87 = vadd.f32 %v83, %v86
    %s88 = sld [smem:[#allocation2 + $0x9]]
    %v89 = vstv %s88
    %v90 = vmul.f32 %v48, %v89
    %v91 = vadd.f32 %v87, %v90
    %s92 = sld [smem:[#allocation2 + $0xa]]
    %v93 = vstv %s92
    %v94 = vmul.f32 %v54, %v93
    %v95 = vadd.f32 %v91, %v94
    %s96 = sld [smem:[#allocation2 + $0xb]]
    %v97 = vstv %s96
    %v98 = vmul.f32 %v60, %v97
    %v99 = vadd.f32 %v95, %v98
    %s100 = sld [smem:[#allocation2 + $0xc]]
    %v101 = vstv %s100
    %v102 = vmul.f32 %v66, %v101
    %v103 = vadd.f32 %v99, %v102
    %s104 = sld [smem:[#allocation2 + $0xd]]
    %v105 = vstv %s104
    %v106 = vmul.f32 %v72, %v105
    %v107 = vadd.f32 %v103, %v106
    %s108 = sld [smem:[#allocation2 + $0x16]]
    %v109 = vstv %s108
    %v110 = vadd.f32 %v107, %v109
    %v111 = vmax.f32 %v110, 0.0
    %s112 = sld [smem:[#allocation2 + $0xe]]
    %v113 = vstv %s112
    %v114 = vmul.f32 %v37, %v113
    %s115 = sld [smem:[#allocation2 + $0xf]]
    %v116 = vstv %s115
    %v117 = vmul.f32 %v42, %v116
    %v118 = vadd.f32 %v114, %v117
    %s119 = sld [smem:[#allocation2 + $0x10]]
    %v120 = vstv %s119
    %v121 = vmul.f32 %v48, %v120
    %v122 = vadd.f32 %v118, %v121
    %s123 = sld [smem:[#allocation2 + $0x11]]
    %v124 = vstv %s123
    %v125 = vmul.f32 %v54, %v124
    %v126 = vadd.f32 %v122, %v125
    %s127 = sld [smem:[#allocation2 + $0x12]]
    %v128 = vstv %s127
    %v129 = vmul.f32 %v60, %v128
    %v130 = vadd.f32 %v126, %v129
    %s131 = sld [smem:[#allocation2 + $0x13]]
    %v132 = vstv %s131
    %v133 = vmul.f32 %v66, %v132
    %v134 = vadd.f32 %v130, %v133
    %s135 = sld [smem:[#allocation2 + $0x14]]
    %v136 = vstv %s135
    %v137 = vmul.f32 %v72, %v136
    %v138 = vadd.f32 %v134, %v137
    %s139 = sld [smem:[#allocation2 + $0x17]]
    %v140 = vstv %s139
    %v141 = vadd.f32 %v138, %v140
    %v142 = vmax.f32 %v141, 0.0
    %s143 = sld [smem:[#allocation2 + $0x18]]
    %v144 = vstv %s143
    %v145 = vmul.f32 %v80, %v144
    %s146 = sld [smem:[#allocation2 + $0x19]]
    %v147 = vstv %s146
    %v148 = vmul.f32 %v111, %v147
    %v149 = vadd.f32 %v145, %v148
    %s150 = sld [smem:[#allocation2 + $0x1a]]
    %v151 = vstv %s150
    %v152 = vmul.f32 %v142, %v151
    %v153 = vadd.f32 %v149, %v152
    %s154 = sld [smem:[#allocation2 + $0x1e]]
    %v155 = vstv %s154
    %v156 = vadd.f32 %v153, %v155
    %s157 = sld [smem:[#allocation2 + $0x1b]]
    %v158 = vstv %s157
    %v159 = vmul.f32 %v80, %v158
    %s160 = sld [smem:[#allocation2 + $0x1c]]
    %v161 = vstv %s160
    %v162 = vmul.f32 %v111, %v161
    %v163 = vadd.f32 %v159, %v162
    %s164 = sld [smem:[#allocation2 + $0x1d]]
    %v165 = vstv %s164
    %v166 = vmul.f32 %v142, %v165
    %v167 = vadd.f32 %v163, %v166
    %s168 = sld [smem:[#allocation2 + $0x1f]]
    %v169 = vstv %s168
    %v170 = vadd.f32 %v167, %v169
    %v171 = vsub.f32 %v170, %v156
    %v172 = vmax.f32 %v171, 0.0
    %v173 = vand.u32 2147483647, %v171
    %v174 = vsub.f32 0.0, %v173
    %v175 = vmul.f32 %v174, 1.442695
    %v176 = vpow.pop %v175
    %v177 = vadd.f32 %v176, 1.0
    %v178 = vlog2.pop %v177
    %v179 = vmul.f32 %v178, 0.6931472
    %v180 = vadd.f32 %v172, %v179
    %v181 = vsub.f32 0.0, %v180
    %182 = vst [vmem:[#allocation7] sm:$0x1] %v181
    %v183 = vsub.f32 %v171, %v180
    %s184 = scalar_lea.vmem [#allocation7], 1
    %185 = vst [vmem:[%s184] sm:$0x1] %v183
    // Predicated region
    $region18: #{tpu_custom_call.1} parent=1 // pred_check
      _
    $region19: #{tpu_custom_call.1} parent=1 // pred_check_branch
      %187 = sbr.rel (0) target = $region21
    $region20: #{tpu_custom_call.1} parent=1 // pred_region
      %s189 = ssub.s32 32, 32
      %190 = vsyncadd [#allocation4], %s189
      %s191 = sshll.u32 [#allocation7], 4
      %s192 = int_to_ptr.vmem [resolvable:$true] %s191
      %197 = dma.vmem_to_hbm [thread:$0]  %s192, 32, %s2, [#allocation4], 16, 16, 1
    $region21: #{tpu_custom_call.1} parent=1 // pred_fallthru
      _
    // Predicated region
    $region22: #{tpu_custom_call.1} parent=1 // pred_check
      _
    $region23: #{tpu_custom_call.1} parent=1 // pred_check_branch
      %199 = sbr.rel (0) target = $region25
    $region24: #{tpu_custom_call.1} parent=1 // pred_region
      %200 = dma.done [#allocation4], 32
    $region25: #{tpu_custom_call.1} parent=1 // pred_fallthru
      _
    %201 = vsyncpa [#allocation3], 1
    %202 = vsyncpa [#allocation4], 1
    %203 = vsyncpa [#allocation5], 1

</llo_original>
